<compile_context>
chip_gen: v5e
topology: v5e:2x2
jax: 0.10.0
libtpu: 0.0.40
codegen_flags: <defaults>
</compile_context>

<pallas_src>
import functools

import jax
import jax.numpy as jnp
from jax.experimental import pallas as pl
from jax.experimental.pallas import tpu as pltpu


# ---------------------------------------------------------------------------
# Main path: whole images per block, grid over batch only.
# ---------------------------------------------------------------------------
def _ca_fused_kernel(x_ref, w1_ref, w2_ref, o_ref, *, inv_hw):
    xv = x_ref[...]                                              # (Nb, C, HW)
    nb = xv.shape[0]

    # Pooling. f32 accumulation for the sum (bf16-safe); padded lanes do not
    # exist here because the block covers exactly the logical HW extent.
    avg = jnp.sum(xv, axis=-1, dtype=jnp.float32) * inv_hw       # (Nb, C)
    mx = jnp.max(xv, axis=-1).astype(jnp.float32)                # (Nb, C)

    # Fused shared MLP (two bias-free 1x1 convs) for both pooled paths.
    pooled = jnp.concatenate([avg, mx], axis=0)                  # (2*Nb, C)
    w1 = w1_ref[...].astype(jnp.float32)                         # (Cr, C)
    w2 = w2_ref[...].astype(jnp.float32)                         # (C, Cr)
    h = jax.lax.dot_general(pooled, w1, (((1,), (1,)), ((), ())),
                            preferred_element_type=jnp.float32)  # (2Nb, Cr)
    h = jnp.maximum(h, 0.0)
    y = jax.lax.dot_general(h, w2, (((1,), (1,)), ((), ())),
                            preferred_element_type=jnp.float32)  # (2Nb, C)
    # TODO(synk): for very small Cr the two near-empty MXU passes could be
    # lowered to VPU broadcast-mul-adds; only worth it if profiling shows them
    # on the per-step critical path.
    attn = jax.nn.sigmoid(y[:nb] + y[nb:]).astype(x_ref.dtype)   # (Nb, C)

    # Scale: re-read x from VMEM so the full block is not live across the MLP.
    o_ref[...] = (x_ref[...] * attn[:, :, None]).astype(o_ref.dtype)


# ---------------------------------------------------------------------------
# Fallback path (single image exceeds block budget): two passes over HW tiles.
# ---------------------------------------------------------------------------
def _ca_pool_kernel(x_ref, w1_ref, w2_ref, attn_ref, sum_sc, max_sc,
                    *, hw, hw_tile, inv_hw):
    t = pl.program_id(1)

    @pl.when(t == 0)
    def _():
        sum_sc[...] = jnp.zeros(sum_sc.shape, sum_sc.dtype)
        max_sc[...] = jnp.full(max_sc.shape, -jnp.inf, max_sc.dtype)

    xv = x_ref[...].astype(jnp.float32)                          # (1, C, hw_tile)
    if hw % hw_tile != 0:
        # Only the final tile is ragged; mask its out-of-bounds lanes.
        lane = jax.lax.broadcasted_iota(jnp.int32, (1, 1, hw_tile), 2)
        valid = (t * hw_tile + lane) < hw
        xs = jnp.where(valid, xv, 0.0)
        xm = jnp.where(valid, xv, -jnp.inf)
    else:
        xs = xv
        xm = xv
    sum_sc[...] += jnp.sum(xs, axis=-1)
    max_sc[...] = jnp.maximum(max_sc[...], jnp.max(xm, axis=-1))

    @pl.when(t == pl.num_programs(1) - 1)
    def _():
        avg = sum_sc[...] * inv_hw                               # (1, C)
        pooled = jnp.concatenate([avg, max_sc[...]], axis=0)     # (2, C)
        w1 = w1_ref[...].astype(jnp.float32)
        w2 = w2_ref[...].astype(jnp.float32)
        h = jax.lax.dot_general(pooled, w1, (((1,), (1,)), ((), ())),
                                preferred_element_type=jnp.float32)
        h = jnp.maximum(h, 0.0)
        y = jax.lax.dot_general(h, w2, (((1,), (1,)), ((), ())),
                                preferred_element_type=jnp.float32)
        attn_ref[...] = jax.nn.sigmoid(y[:1] + y[1:])[:, :, None]   # (1, C, 1)


def _ca_scale_kernel(x_ref, attn_ref, o_ref):
    attn = attn_ref[...].astype(x_ref.dtype)                     # (1, C, 1)
    o_ref[...] = (x_ref[...] * attn).astype(o_ref.dtype)


# ---------------------------------------------------------------------------
# Tiling policy / wrapper.
# ---------------------------------------------------------------------------
_DEFAULT_BLOCK_BYTES = 4 << 20   # ~4 MiB blocks feed v5e/v6e/v7x HBM well


def _num_tensorcores_per_chip():
    try:
        kind = jax.devices()[0].device_kind.lower()
    except Exception:
        return 1
    return 2 if ("v7" in kind or "tpu7" in kind) else 1


def _pick_nb(n, bytes_per_image, target_bytes, num_cores):
    """Largest divisor of n whose block fits the budget.  On multi-TC chips
    (v7x) prefer a step count that is a multiple of the core count so both
    TensorCores get work; on single-TC chips a single grid step is fine."""
    fitting = [d for d in range(1, n + 1)
               if n % d == 0 and d * bytes_per_image <= target_bytes]
    if not fitting:
        return None          # single image too big -> spatial-tiling fallback
    if num_cores > 1:
        preferred = [d for d in fitting if (n // d) % num_cores == 0]
        if preferred:
            return max(preferred)
    return max(fitting)


def _vmem_limit(block_bytes, weight_bytes):
    # 2x in + 2x out double-buffered blocks + one block of temporary headroom
    # + resident weights + slack.  Cap at 64 MiB (v7x physical VMEM per TC).
    need = 5 * block_bytes + 2 * weight_bytes + (2 << 20)
    return int(min(64 << 20, max(32 << 20, need)))


def channel_attention(x, w1, w2, *, max_block_bytes=_DEFAULT_BLOCK_BYTES):
    """x: (N, C, H, W). w1: (C//r, C) [1x1-conv weight squeezed]. w2: (C, C//r)."""
    N, C, H, W = x.shape
    HW = H * W
    Cr = w1.shape[0]
    itemsize = jnp.dtype(x.dtype).itemsize
    weight_bytes = (w1.size + w2.size) * jnp.dtype(w1.dtype).itemsize
    inv_hw = 1.0 / HW

    x2 = x.reshape(N, C, HW)                 # free reshape (contiguous dims)
    bytes_per_image = C * HW * itemsize
    nb = _pick_nb(N, bytes_per_image, max_block_bytes, _num_tensorcores_per_chip())

    if nb is not None:
        # ---- main path: whole images per block, grid over batch only ----
        block_bytes = nb * bytes_per_image
        cost = pl.CostEstimate(
            flops=2 * N * C * HW + 8 * N * C * Cr + 2 * N * C,
            transcendentals=N * C,
            bytes_accessed=2 * N * C * HW * itemsize + 2 * weight_bytes,
        )
        out = pl.pallas_call(
            functools.partial(_ca_fused_kernel, inv_hw=inv_hw),
            out_shape=jax.ShapeDtypeStruct((N, C, HW), x.dtype),
            grid_spec=pltpu.PrefetchScalarGridSpec(
                num_scalar_prefetch=0,
                grid=(N // nb,),
                in_specs=[
                    pl.BlockSpec((nb, C, HW), lambda b: (b, 0, 0)),
                    pl.BlockSpec((Cr, C), lambda b: (0, 0)),   # resident
                    pl.BlockSpec((C, Cr), lambda b: (0, 0)),   # resident
                ],
                out_specs=pl.BlockSpec((nb, C, HW), lambda b: (b, 0, 0)),
            ),
            compiler_params=pltpu.CompilerParams(
                dimension_semantics=("parallel",),
                vmem_limit_bytes=_vmem_limit(block_bytes, weight_bytes)),
            cost_estimate=cost,
        )(x2, w1, w2)
        return out.reshape(N, C, H, W)

    # ---- fallback: spatial tiling (pool/accumulate pass, then scale pass) ----
    hw_tile = max(128, (max_block_bytes // (C * itemsize)) // 128 * 128)
    hw_tile = min(hw_tile, ((HW + 127) // 128) * 128)
    n_tiles = (HW + hw_tile - 1) // hw_tile
    tile_bytes = C * hw_tile * itemsize
    vmem = _vmem_limit(tile_bytes, weight_bytes)

    attn = pl.pallas_call(
        functools.partial(_ca_pool_kernel, hw=HW, hw_tile=hw_tile, inv_hw=inv_hw),
        out_shape=jax.ShapeDtypeStruct((N, C, 1), jnp.float32),
        grid_spec=pltpu.PrefetchScalarGridSpec(
            num_scalar_prefetch=0,
            grid=(N, n_tiles),
            in_specs=[
                pl.BlockSpec((1, C, hw_tile), lambda n, t: (n, 0, t)),
                pl.BlockSpec((Cr, C), lambda n, t: (0, 0)),
                pl.BlockSpec((C, Cr), lambda n, t: (0, 0)),
            ],
            out_specs=pl.BlockSpec((1, C, 1), lambda n, t: (n, 0, 0)),
            scratch_shapes=[pltpu.VMEM((1, C), jnp.float32),
                            pltpu.VMEM((1, C), jnp.float32)],
        ),
        compiler_params=pltpu.CompilerParams(
            dimension_semantics=("parallel", "arbitrary"),
            vmem_limit_bytes=vmem),
    )(x2, w1, w2)

    out = pl.pallas_call(
        _ca_scale_kernel,
        out_shape=jax.ShapeDtypeStruct((N, C, HW), x.dtype),
        grid_spec=pltpu.PrefetchScalarGridSpec(
            num_scalar_prefetch=0,
            grid=(N, n_tiles),
            in_specs=[
                pl.BlockSpec((1, C, hw_tile), lambda n, t: (n, 0, t)),
                pl.BlockSpec((1, C, 1), lambda n, t: (n, 0, 0)),
            ],
            out_specs=pl.BlockSpec((1, C, hw_tile), lambda n, t: (n, 0, t)),
        ),
        compiler_params=pltpu.CompilerParams(
            dimension_semantics=("parallel", "parallel"),
            vmem_limit_bytes=vmem),
    )(x2, attn)
    return out.reshape(N, C, H, W)


# ---------------------------------------------------------------------------
# Reference + tests.
# ---------------------------------------------------------------------------
def channel_attention_ref(x, w1, w2):
    avg = jnp.mean(x, axis=(2, 3))                    # (N, C)
    mx = jnp.max(x, axis=(2, 3))                      # (N, C)

    def fc(v):
        return jnp.maximum(v @ w1.T, 0.0) @ w2.T

    attn = jax.nn.sigmoid(fc(avg) + fc(mx))
    return x * attn[:, :, None, None]


def _run_case(key, N, C, H, W, reduction, **kwargs):
    Cr = max(C // reduction, 1)
    kx, k1, k2 = jax.random.split(key, 3)
    x = jax.random.normal(kx, (N, C, H, W), dtype=jnp.float32)
    # Conv2d(C, C//r, 1, bias=False) weight (Cr, C, 1, 1) -> (Cr, C)
    w1 = jax.random.normal(k1, (Cr, C), dtype=jnp.float32) * (1.0 / jnp.sqrt(C))
    # Conv2d(C//r, C, 1, bias=False) weight (C, Cr, 1, 1) -> (C, Cr)
    w2 = jax.random.normal(k2, (C, Cr), dtype=jnp.float32) * (1.0 / jnp.sqrt(Cr))

    out = jax.block_until_ready(channel_attention(x, w1, w2, **kwargs))
    ref = channel_attention_ref(x, w1, w2)
    assert out.shape == (N, C, H, W)
    assert jnp.allclose(out, ref, atol=1e-5, rtol=1e-5), "mismatch vs reference"


if __name__ == "__main__":
    key = jax.random.PRNGKey(0)
    k0, k1, k2 = jax.random.split(key, 3)

    # Primary case: channel=32, reduction=16 -> hidden=2; HW=256 (lane-dense).
    _run_case(k0, N=2, C=32, H=16, W=16, reduction=16)
    # Non-128-multiple spatial (7x7=49): ragged lane group handled in-kernel,
    # no wrapper pad/slice, Nb>1 batching.
    _run_case(k1, N=4, C=32, H=7, W=7, reduction=16)
    # Force the spatial-tiling fallback (image > block budget): pooling pass
    # with accumulators + masked ragged tail tile, then scale pass.
    _run_case(k2, N=2, C=32, H=40, W=40, reduction=16, max_block_bytes=128 * 1024)

    print("KERNEL_OK")
</pallas_src>

<mosaic_0001>
module attributes {stable_mosaic.version = 11 : i64} {
  func.func @_ca_fused_kernel(%arg0: i32, %arg1: memref<2x32x256xf32, #tpu.memory_space<vmem>>, %arg2: memref<2x32xf32, #tpu.memory_space<vmem>>, %arg3: memref<32x2xf32, #tpu.memory_space<vmem>>, %arg4: memref<2x32x256xf32, #tpu.memory_space<vmem>>) attributes {dimension_semantics = [#tpu.dimension_semantics<parallel>], iteration_bounds = array<i64: 1>, scalar_prefetch = 0 : i64, scratch_operands = 0 : i64, tpu.core_type = #tpu.core_type<tc>, window_params = [{transform_indices = @transform_0, window_bounds = array<i64: 2, 32, 256>}, {pipeline_mode = #tpu.pipeline_mode<synchronous>, transform_indices = @transform_1, window_bounds = array<i64: 2, 32>}, {pipeline_mode = #tpu.pipeline_mode<synchronous>, transform_indices = @transform_2, window_bounds = array<i64: 32, 2>}, {transform_indices = @transform_3, window_bounds = array<i64: 2, 32, 256>}]} {
    %c0 = arith.constant 0 : index
    %c0_0 = arith.constant 0 : index
    %c0_1 = arith.constant 0 : index
    %0 = vector.load %arg1[%c0, %c0_0, %c0_1] : memref<2x32x256xf32, #tpu.memory_space<vmem>>, vector<2x32x256xf32>
    %cst = arith.constant dense<0.000000e+00> : vector<2x32xf32>
    %1 = vector.multi_reduction <add>, %0, %cst [2] : vector<2x32x256xf32> to vector<2x32xf32>
    %cst_2 = arith.constant 3.906250e-03 : f32
    %2 = vector.broadcast %cst_2 : f32 to vector<2x32xf32>
    %3 = arith.mulf %1, %2 : vector<2x32xf32>
    %cst_3 = arith.constant dense<0xFF800000> : vector<2x32xf32>
    %4 = vector.multi_reduction <maximumf>, %0, %cst_3 [2] : vector<2x32x256xf32> to vector<2x32xf32>
    %5 = tpu.concatenate %3, %4 in 0 : vector<2x32xf32>, vector<2x32xf32> -> vector<4x32xf32>
    %c0_4 = arith.constant 0 : index
    %c0_5 = arith.constant 0 : index
    %6 = vector.load %arg2[%c0_4, %c0_5] : memref<2x32xf32, #tpu.memory_space<vmem>>, vector<2x32xf32>
    %c0_6 = arith.constant 0 : index
    %c0_7 = arith.constant 0 : index
    %7 = vector.load %arg3[%c0_6, %c0_7] : memref<32x2xf32, #tpu.memory_space<vmem>>, vector<32x2xf32>
    %cst_8 = arith.constant dense<0.000000e+00> : vector<4x2xf32>
    %8 = tpu.matmul %5, %6, %cst_8 {dimension_numbers = #tpu.dot_dimension_numbers<[1], [1], [0], [0], [0, 0, 1, 0], [], []>} : vector<4x32xf32>, vector<2x32xf32>, vector<4x2xf32> -> vector<4x2xf32>
    %cst_9 = arith.constant 0.000000e+00 : f32
    %9 = vector.broadcast %cst_9 : f32 to vector<4x2xf32>
    %10 = arith.maximumf %8, %9 : vector<4x2xf32>
    %cst_10 = arith.constant dense<0.000000e+00> : vector<4x32xf32>
    %11 = tpu.matmul %10, %7, %cst_10 {dimension_numbers = #tpu.dot_dimension_numbers<[1], [1], [0], [0], [0, 0, 1, 0], [], []>} : vector<4x2xf32>, vector<32x2xf32>, vector<4x32xf32> -> vector<4x32xf32>
    %12 = vector.extract_strided_slice %11 {offsets = [0, 0], sizes = [2, 32], strides = [1, 1]} : vector<4x32xf32> to vector<2x32xf32>
    %13 = vector.extract_strided_slice %11 {offsets = [2, 0], sizes = [2, 32], strides = [1, 1]} : vector<4x32xf32> to vector<2x32xf32>
    %14 = arith.addf %12, %13 : vector<2x32xf32>
    %15 = arith.negf %14 : vector<2x32xf32>
    %16 = math.exp %15 : vector<2x32xf32>
    %cst_11 = arith.constant 1.000000e+00 : f32
    %17 = vector.broadcast %cst_11 : f32 to vector<2x32xf32>
    %18 = arith.addf %17, %16 : vector<2x32xf32>
    %19 = arith.divf %17, %18 : vector<2x32xf32>
    %c0_12 = arith.constant 0 : index
    %c0_13 = arith.constant 0 : index
    %c0_14 = arith.constant 0 : index
    %20 = vector.load %arg1[%c0_12, %c0_13, %c0_14] : memref<2x32x256xf32, #tpu.memory_space<vmem>>, vector<2x32x256xf32>
    %21 = vector.shape_cast %19 : vector<2x32xf32> to vector<2x32x1xf32>
    %22 = vector.broadcast %21 : vector<2x32x1xf32> to vector<2x32x256xf32>
    %23 = arith.mulf %20, %22 : vector<2x32x256xf32>
    %c0_15 = arith.constant 0 : index
    %c0_16 = arith.constant 0 : index
    %c0_17 = arith.constant 0 : index
    %24 = vector.load %arg4[%c0_15, %c0_16, %c0_17] : memref<2x32x256xf32, #tpu.memory_space<vmem>>, vector<2x32x256xf32>
    tpu.vector_store %arg4[%c0_15, %c0_16, %c0_17], %23 {strides = array<i32>} : memref<2x32x256xf32, #tpu.memory_space<vmem>>, vector<2x32x256xf32>,
    return
  }
  func.func @transform_0(%arg0: i32) -> (i32, i32, i32) {
    %c0_i32 = arith.constant 0 : i32
    %c0_i32_0 = arith.constant 0 : i32
    %c0_i32_1 = arith.constant 0 : i32
    return %arg0, %c0_i32, %c0_i32_0 : i32, i32, i32
  }
  func.func @transform_1(%arg0: i32) -> (i32, i32) {
    %c0_i32 = arith.constant 0 : i32
    %c0_i32_0 = arith.constant 0 : i32
    %c0_i32_1 = arith.constant 0 : i32
    return %c0_i32, %c0_i32_0 : i32, i32
  }
  func.func @transform_2(%arg0: i32) -> (i32, i32) {
    %c0_i32 = arith.constant 0 : i32
    %c0_i32_0 = arith.constant 0 : i32
    %c0_i32_1 = arith.constant 0 : i32
    return %c0_i32, %c0_i32_0 : i32, i32
  }
  func.func @transform_3(%arg0: i32) -> (i32, i32, i32) {
    %c0_i32 = arith.constant 0 : i32
    %c0_i32_0 = arith.constant 0 : i32
    %c0_i32_1 = arith.constant 0 : i32
    return %arg0, %c0_i32, %c0_i32_0 : i32, i32, i32
  }
}

</mosaic_0001>

<llo_original>
// kernel: tpu_custom_call.1
$region0: #{tpu_custom_call.1}
  #allocation0 [shape = 'u32[]', space=smem, size = 0x4, offset = 0x4, fixed_abs, tag = 'smem constant byte address 0x4 - core index']
  #allocation1 [shape = 'u32[72,128]{1,0:T(1,128)}', space=vmem, size = 0x9000, scoped, tag = 'internal scratch']
  %s0 = inlined_call_operand.hbm [shape: f32[2,32,256], index: 0, kind: input, shape index: {}]
  %s1 = inlined_call_operand.vmem [shape: f32[2,32], index: 1, kind: input, shape index: {}]
  %s2 = inlined_call_operand.vmem [shape: f32[32,2], index: 2, kind: input, shape index: {}]
  %s3 = inlined_call_operand.hbm [shape: f32[2,32,256], index: 3, kind: output, shape index: {}]
  %s4 = sld [smem:[#allocation0]]
  $region26: #{tpu_custom_call.1} parent=0
    _
  %s6 = ssub.s32 1, %s4
  %s7 = scalar_select 0, %s6, %s4
  $region1: #{tpu_custom_call.1} parent=0
    #allocation2 [shape = 'u8[65536]{0}', space=vmem, size = 0x10000, scoped, tag = 'input window, operand 0, single buffered']
    #allocation3 [shape = 's32[1]{0}', space=sflag, size = 0x4, scoped, tag = 'scoped memory for tpu_custom_call.1']
    #allocation4 [shape = 's32[1]{0}', space=sflag, size = 0x4, scoped, tag = 'scoped memory for tpu_custom_call.1']
    #allocation5 [shape = 'u8[65536]{0}', space=vmem, size = 0x10000, scoped, tag = 'output window, operand 0, single buffered']
    %8 = vsyncpa [#allocation3], 0
    %9 = vsyncpa [#allocation4], 0
    // Predicated region
    $region2: #{tpu_custom_call.1} parent=1 // pred_check
      _
    $region3: #{tpu_custom_call.1} parent=1 // pred_check_branch
      %11 = sbr.rel (0) target = $region5
    $region4: #{tpu_custom_call.1} parent=1 // pred_region
      %13 = vsyncadd [#allocation3], 0
      %s14 = sshll.u32 %s0, 4
      %s15 = int_to_ptr.hbm [resolvable:$true] %s14
      %s16 = sshll.u32 [#allocation2], 4
      %s17 = int_to_ptr.vmem [resolvable:$true] %s16
      %22 = dma.hbm_to_vmem [thread:$0]  %s15, 2048, %s17, [#allocation3], 256, 256, 16
    $region5: #{tpu_custom_call.1} parent=1 // pred_fallthru
      _
    // Predicated region
    $region6: #{tpu_custom_call.1} parent=1 // pred_check
      _
    $region7: #{tpu_custom_call.1} parent=1 // pred_check_branch
      %24 = sbr.rel (0) target = $region9
    $region8: #{tpu_custom_call.1} parent=1 // pred_region
      _
    $region9: #{tpu_custom_call.1} parent=1 // pred_fallthru
      _
    // Predicated region
    $region10: #{tpu_custom_call.1} parent=1 // pred_check
      _
    $region11: #{tpu_custom_call.1} parent=1 // pred_check_branch
      %26 = sbr.rel (0) target = $region13
    $region12: #{tpu_custom_call.1} parent=1 // pred_region
      _
    $region13: #{tpu_custom_call.1} parent=1 // pred_fallthru
      _
    // Predicated region
    $region14: #{tpu_custom_call.1} parent=1 // pred_check
      _
    $region15: #{tpu_custom_call.1} parent=1 // pred_check_branch
      %28 = sbr.rel (0) target = $region17
    $region16: #{tpu_custom_call.1} parent=1 // pred_region
      %30 = dma.done [#allocation3], 2048
    $region17: #{tpu_custom_call.1} parent=1 // pred_fallthru
      _
    %v31 = vld [vmem:[#allocation2] sm:$0xff]
    %v32 = vld [vmem:[#allocation2 + $0x8] sm:$0xff]
    %v33 = vld [vmem:[#allocation2 + $0x10] sm:$0xff]
    %v34 = vld [vmem:[#allocation2 + $0x18] sm:$0xff]
    %v35 = vld [vmem:[#allocation2 + $0x20] sm:$0xff]
    %v36 = vld [vmem:[#allocation2 + $0x28] sm:$0xff]
    %v37 = vld [vmem:[#allocation2 + $0x30] sm:$0xff]
    %v38 = vld [vmem:[#allocation2 + $0x38] sm:$0xff]
    %v39 = vld [vmem:[#allocation2 + $0x40] sm:$0xff]
    %v40 = vld [vmem:[#allocation2 + $0x48] sm:$0xff]
    %v41 = vld [vmem:[#allocation2 + $0x50] sm:$0xff]
    %v42 = vld [vmem:[#allocation2 + $0x58] sm:$0xff]
    %v43 = vld [vmem:[#allocation2 + $0x60] sm:$0xff]
    %v44 = vld [vmem:[#allocation2 + $0x68] sm:$0xff]
    %v45 = vld [vmem:[#allocation2 + $0x70] sm:$0xff]
    %v46 = vld [vmem:[#allocation2 + $0x78] sm:$0xff]
    %v47 = vadd.f32 %v31, %v32
    %48 = vadd.xlane.f32.xlu0 %v47
    %v49 = vpop.xlane.xlu0 %48
    %v50 = vadd.f32 %v33, %v34
    %51 = vadd.xlane.f32.xlu0 %v50
    %v52 = vpop.xlane.xlu0 %51
    %v53 = vadd.f32 %v35, %v36
    %54 = vadd.xlane.f32.xlu0 %v53
    %v55 = vpop.xlane.xlu0 %54
    %v56 = vadd.f32 %v37, %v38
    %57 = vadd.xlane.f32.xlu0 %v56
    %v58 = vpop.xlane.xlu0 %57
    %v59 = vadd.f32 %v39, %v40
    %60 = vadd.xlane.f32.xlu0 %v59
    %v61 = vpop.xlane.xlu0 %60
    %v62 = vadd.f32 %v41, %v42
    %63 = vadd.xlane.f32.xlu0 %v62
    %v64 = vpop.xlane.xlu0 %63
    %v65 = vadd.f32 %v43, %v44
    %66 = vadd.xlane.f32.xlu0 %v65
    %v67 = vpop.xlane.xlu0 %66
    %v68 = vadd.f32 %v45, %v46
    %69 = vadd.xlane.f32.xlu0 %v68
    %v70 = vpop.xlane.xlu0 %69
    %v71 = vmul.f32 %v49, 0.00390625
    %v72 = vmul.f32 %v52, 0.00390625
    %v73 = vmul.f32 %v55, 0.00390625
    %v74 = vmul.f32 %v58, 0.00390625
    %v75 = vmul.f32 %v61, 0.00390625
    %v76 = vmul.f32 %v64, 0.00390625
    %v77 = vmul.f32 %v67, 0.00390625
    %v78 = vmul.f32 %v70, 0.00390625
    %v79 = vmax.f32 %v31, %v32
    %80 = vmax.xlane.f32.xlu0 %v79
    %v81 = vpop.xlane.xlu0 %80
    %v82 = vmax.f32 %v33, %v34
    %83 = vmax.xlane.f32.xlu0 %v82
    %v84 = vpop.xlane.xlu0 %83
    %v85 = vmax.f32 %v35, %v36
    %86 = vmax.xlane.f32.xlu0 %v85
    %v87 = vpop.xlane.xlu0 %86
    %v88 = vmax.f32 %v37, %v38
    %89 = vmax.xlane.f32.xlu0 %v88
    %v90 = vpop.xlane.xlu0 %89
    %v91 = vmax.f32 %v39, %v40
    %92 = vmax.xlane.f32.xlu0 %v91
    %v93 = vpop.xlane.xlu0 %92
    %v94 = vmax.f32 %v41, %v42
    %95 = vmax.xlane.f32.xlu0 %v94
    %v96 = vpop.xlane.xlu0 %95
    %v97 = vmax.f32 %v43, %v44
    %98 = vmax.xlane.f32.xlu0 %v97
    %v99 = vpop.xlane.xlu0 %98
    %v100 = vmax.f32 %v45, %v46
    %101 = vmax.xlane.f32.xlu0 %v100
    %v102 = vpop.xlane.xlu0 %101
    %v111 = vlaneseq
    %v112 = vand.u32 %v111, 127
    %v113 = vperm.slane %v71, %v112
    %v114 = vadd.s32 %v112, 4294967288
    %v115 = vperm.slane %v72, %v114
    %vm116 = vcmask 130112
    %v117 = vsel %vm116, %v115, %v113
    %v118 = vadd.s32 %v112, 4294967280
    %v119 = vperm.slane %v73, %v118
    %vm120 = vcmask 195712
    %v121 = vsel %vm120, %v119, %v117
    %v122 = vadd.s32 %v112, 4294967272
    %v123 = vperm.slane %v74, %v122
    %vm124 = vcmask 261312
    %v125 = vsel %vm124, %v123, %v121
    %v126 = vperm.slane %v75, %v112
    %v127 = vperm.slane %v76, %v114
    %v128 = vsel %vm116, %v127, %v126
    %v129 = vperm.slane %v77, %v118
    %v130 = vsel %vm120, %v129, %v128
    %v131 = vperm.slane %v78, %v122
    %v132 = vsel %vm124, %v131, %v130
    %vm133 = vcmask 1041409
    %v134 = vsel %vm133, %v132, %v125
    %v144 = vperm.slane %v81, %v112
    %v145 = vperm.slane %v84, %v114
    %v146 = vsel %vm116, %v145, %v144
    %v147 = vperm.slane %v87, %v118
    %v148 = vsel %vm120, %v147, %v146
    %v149 = vperm.slane %v90, %v122
    %v150 = vsel %vm124, %v149, %v148
    %v151 = vperm.slane %v93, %v112
    %v152 = vperm.slane %v96, %v114
    %v153 = vsel %vm116, %v152, %v151
    %v154 = vperm.slane %v99, %v118
    %v155 = vsel %vm120, %v154, %v153
    %v156 = vperm.slane %v102, %v122
    %v157 = vsel %vm124, %v156, %v155
    %vm158 = vcmask 1043459
    %v159 = vsel %vm158, %v157, %v150
    %vm161 = vcmask 1041408
    %v162 = vsel %vm161, %v134, %v159
    %v163 = vld [vmem:[%s1] sm:$0x3]
    %v164 = vld [vmem:[%s2] sm:$0xff]
    %v165 = vld [vmem:[%s2 + $0x8] sm:$0xff]
    %v166 = vld [vmem:[%s2 + $0x10] sm:$0xff]
    %v167 = vld [vmem:[%s2 + $0x18] sm:$0xff]
    %vm168 = vcmask 261120
    %v170 = vsel %vm168, %v162, 0
    %v173 = vsel %vm168, %v163, 0
    %175 = vmatpush.xpose.msra.mxu0 0.0
    %176 = vmatpush.xpose.msra.mxu0 0.0
    %177 = vmatpush.xpose.msra.mxu0 0.0
    %178 = vmatpush.xpose.msra.mxu0 0.0
    %179 = vmatpush.xpose.msra.mxu0 0.0
    %180 = vmatpush.xpose.msra.mxu0 0.0
    %181 = vmatpush.xpose.msra.mxu0 0.0
    %182 = vmatpush.xpose.msra.mxu0 0.0
    %183 = vmatpush.xpose.msra.mxu0 0.0
    %184 = vmatpush.xpose.msra.mxu0 0.0
    %185 = vmatpush.xpose.msra.mxu0 0.0
    %186 = vmatpush.xpose.msra.mxu0 0.0
    %187 = vmatpush.xpose.msra.mxu0 0.0
    %188 = vmatpush.xpose.msra.mxu0 0.0
    %189 = vmatpush.xpose.msra.mxu0 0.0
    %190 = vmatpush.xpose.msra.mxu0 %v173
    %191 = vmatmul.f32.gmra.mxu0 %v170
    %v192 = vpop.f32.mrf.mxu0
    %v193 = vadd.f32 0.0, %v192
    %194 = vdwg.mxu0
    %v195 = vmax.f32 %v193, 0.0
    %vm196 = vcmask 15360
    %v198 = vsel %vm196, %v195, 0
    %v201 = vsel %vm196, %v164, 0
    %v204 = vsel %vm196, %v165, 0
    %v207 = vsel %vm196, %v166, 0
    %v210 = vsel %vm196, %v167, 0
    %212 = vmatpush.xpose.msra.mxu0 0.0
    %213 = vmatpush.xpose.msra.mxu0 0.0
    %214 = vmatpush.xpose.msra.mxu0 0.0
    %215 = vmatpush.xpose.msra.mxu0 0.0
    %216 = vmatpush.xpose.msra.mxu0 0.0
    %217 = vmatpush.xpose.msra.mxu0 0.0
    %218 = vmatpush.xpose.msra.mxu0 0.0
    %219 = vmatpush.xpose.msra.mxu0 0.0
    %220 = vmatpush.xpose.msra.mxu0 0.0
    %221 = vmatpush.xpose.msra.mxu0 0.0
    %222 = vmatpush.xpose.msra.mxu0 0.0
    %223 = vmatpush.xpose.msra.mxu0 0.0
    %224 = vmatpush.xpose.msra.mxu0 %v210
    %225 = vmatpush.xpose.msra.mxu0 %v207
    %226 = vmatpush.xpose.msra.mxu0 %v204
    %227 = vmatpush.xpose.msra.mxu0 %v201
    %228 = vmatmul.f32.gmra.mxu0 %v198
    %v229 = vpop.f32.mrf.mxu0
    %v230 = vadd.f32 0.0, %v229
    %231 = vdwg.mxu0
    %v233 = vrot.slane %v230, 2
    %v235 = vadd.f32 %v230, %v233
    %v236 = vxor.u32 %v235, 2147483648
    %v237 = vmul.f32 %v236, 1.442695
    %v238 = vpow.pop %v237
    %v239 = vadd.f32 %v238, 1.0
    %v240 = vrcp.pop %v239
    %v241 = vmul.f32 %v239, %v240
    %v242 = vsub.f32 1.0, %v241
    %v243 = vmul.f32 %v240, %v242
    %v244 = vadd.f32 %v240, %v243
    %vm245 = vweird.f32 %v239
    %vm246 = vweird.f32 %v240
    %vm247 = vmor %vm245, %vm246
    %v248 = vsel %vm247, %v240, %v244
    %v249 = vand.u32 2147483647, %v239
    %vm250 = vcmp.eq.f32.partialorder %v249, 8.507059e+37
    %v251 = vand.u32 %v239, 2147483648
    %v252 = vor.u32 1.1754944e-38, %v251
    %v253 = vsel %vm250, %v252, %v248
    %v254 = vmul.f32 1.0, %v253
    %v255 = vperm.slane %v254, 0
    %v256 = vlaneseq
    %v257 = vshrl.u32 %v256, 7
    %259 = vset.pattern.permute.xlu0 %v257
    %260 = vperm.xlu0 %259, %v255
    %v261 = vpop.permute.xlu0 %260
    %v262 = vlaneseq
    %v263 = vshrl.u32 %v262, 7
    %v264 = vadd.s32 %v263, 8
    %265 = vset.pattern.permute.xlu0 %v264
    %266 = vperm.xlu0 %265, %v255
    %v267 = vpop.permute.xlu0 %266
    %v268 = vlaneseq
    %v269 = vshrl.u32 %v268, 7
    %v270 = vadd.s32 %v269, 16
    %271 = vset.pattern.permute.xlu0 %v270
    %272 = vperm.xlu0 %271, %v255
    %v273 = vpop.permute.xlu0 %272
    %v274 = vlaneseq
    %v275 = vshrl.u32 %v274, 7
    %v276 = vadd.s32 %v275, 24
    %277 = vset.pattern.permute.xlu0 %v276
    %278 = vperm.xlu0 %277, %v255
    %v279 = vpop.permute.xlu0 %278
    %v280 = vperm.slane %v254, 1
    %v281 = vlaneseq
    %v282 = vshrl.u32 %v281, 7
    %284 = vset.pattern.permute.xlu0 %v282
    %285 = vperm.xlu0 %284, %v280
    %v286 = vpop.permute.xlu0 %285
    %v287 = vlaneseq
    %v288 = vshrl.u32 %v287, 7
    %v289 = vadd.s32 %v288, 8
    %290 = vset.pattern.permute.xlu0 %v289
    %291 = vperm.xlu0 %290, %v280
    %v292 = vpop.permute.xlu0 %291
    %v293 = vlaneseq
    %v294 = vshrl.u32 %v293, 7
    %v295 = vadd.s32 %v294, 16
    %296 = vset.pattern.permute.xlu0 %v295
    %297 = vperm.xlu0 %296, %v280
    %v298 = vpop.permute.xlu0 %297
    %v299 = vlaneseq
    %v300 = vshrl.u32 %v299, 7
    %v301 = vadd.s32 %v300, 24
    %302 = vset.pattern.permute.xlu0 %v301
    %303 = vperm.xlu0 %302, %v280
    %v304 = vpop.permute.xlu0 %303
    %v305 = vmul.f32 %v31, %v261
    %v306 = vmul.f32 %v32, %v261
    %v307 = vmul.f32 %v33, %v267
    %v308 = vmul.f32 %v34, %v267
    %v309 = vmul.f32 %v35, %v273
    %v310 = vmul.f32 %v36, %v273
    %v311 = vmul.f32 %v37, %v279
    %v312 = vmul.f32 %v38, %v279
    %v313 = vmul.f32 %v39, %v286
    %v314 = vmul.f32 %v40, %v286
    %v315 = vmul.f32 %v41, %v292
    %v316 = vmul.f32 %v42, %v292
    %v317 = vmul.f32 %v43, %v298
    %v318 = vmul.f32 %v44, %v298
    %v319 = vmul.f32 %v45, %v304
    %v320 = vmul.f32 %v46, %v304
    %321 = vst [vmem:[#allocation5] sm:$0xff] %v305
    %322 = vst [vmem:[#allocation5 + $0x8] sm:$0xff] %v306
    %323 = vst [vmem:[#allocation5 + $0x10] sm:$0xff] %v307
    %324 = vst [vmem:[#allocation5 + $0x18] sm:$0xff] %v308
    %325 = vst [vmem:[#allocation5 + $0x20] sm:$0xff] %v309
    %326 = vst [vmem:[#allocation5 + $0x28] sm:$0xff] %v310
    %327 = vst [vmem:[#allocation5 + $0x30] sm:$0xff] %v311
    %328 = vst [vmem:[#allocation5 + $0x38] sm:$0xff] %v312
    %329 = vst [vmem:[#allocation5 + $0x40] sm:$0xff] %v313
    %330 = vst [vmem:[#allocation5 + $0x48] sm:$0xff] %v314
    %331 = vst [vmem:[#allocation5 + $0x50] sm:$0xff] %v315
    %332 = vst [vmem:[#allocation5 + $0x58] sm:$0xff] %v316
    %333 = vst [vmem:[#allocation5 + $0x60] sm:$0xff] %v317
    %334 = vst [vmem:[#allocation5 + $0x68] sm:$0xff] %v318
    %335 = vst [vmem:[#allocation5 + $0x70] sm:$0xff] %v319
    %336 = vst [vmem:[#allocation5 + $0x78] sm:$0xff] %v320
    // Predicated region
    $region18: #{tpu_custom_call.1} parent=1 // pred_check
      _
    $region19: #{tpu_custom_call.1} parent=1 // pred_check_branch
      %338 = sbr.rel (0) target = $region21
    $region20: #{tpu_custom_call.1} parent=1 // pred_region
      %340 = vsyncadd [#allocation4], 0
      %s341 = sshll.u32 [#allocation5], 4
      %s342 = int_to_ptr.vmem [resolvable:$true] %s341
      %s343 = sshll.u32 %s3, 4
      %s344 = int_to_ptr.hbm [resolvable:$true] %s343
      %349 = dma.vmem_to_hbm [thread:$0]  %s342, 2048, %s344, [#allocation4], 256, 256, 16
    $region21: #{tpu_custom_call.1} parent=1 // pred_fallthru
      _
    // Predicated region
    $region22: #{tpu_custom_call.1} parent=1 // pred_check
      _
    $region23: #{tpu_custom_call.1} parent=1 // pred_check_branch
      %351 = sbr.rel (0) target = $region25
    $region24: #{tpu_custom_call.1} parent=1 // pred_region
      %353 = dma.done [#allocation4], 2048
    $region25: #{tpu_custom_call.1} parent=1 // pred_fallthru
      _
    %354 = vsyncpa [#allocation3], 1
    %355 = vsyncpa [#allocation4], 1

</llo_original>
